<compile_context>
chip_gen: v5e
topology: v5e:2x2
jax: 0.10.0
libtpu: 0.0.40
codegen_flags: <defaults>
</compile_context>

<pallas_src>
import functools

import jax
import jax.numpy as jnp
from jax import lax
from jax.experimental import pallas as pl
from jax.experimental.pallas import tpu as pltpu


def _distance_loss_kernel(wo_ref, relw_ref, sel_ref, out_ref, *, margin: float,
                          batch: int):
    wo = wo_ref[...].astype(jnp.float32)        # (B, D)
    relw = relw_ref[...].astype(jnp.float32)    # (NR, D)
    sel = sel_ref[...].astype(jnp.float32)      # (B + NR, NR) == [in_y; all_y]

    B = batch
    NR = relw.shape[0]

    in_y = sel[:B]                              # (B, NR)

    # ---- F.normalize(wo): row L2 normalization via rsqrt (EUP slot) ---------
    sumsq = jnp.sum(wo * wo, axis=1, keepdims=True)            # (B, 1)
    inv_norm = lax.rsqrt(jnp.maximum(sumsq, 1e-24))            # == 1 / max(||wo||, 1e-12)
    wo_norm = wo * inv_norm                                     # (B, D)
    wn_sq = sumsq * inv_norm * inv_norm                         # ||wo_norm||^2, (B, 1)

    # ---- fused selector matmul: one MXU push for rel_emb AND ay_emb ---------
    emb = jnp.dot(sel, relw, preferred_element_type=jnp.float32)   # (B+NR, D)
    rel_emb = emb[:B]                                              # (B, D)
    ay_emb = emb[B:]                                               # (NR, D)

    # ---- ground-truth distance: exact squared-diff (no cancellation) --------
    gt_diff = wo_norm - rel_emb
    gt_d2 = jnp.sum(gt_diff * gt_diff, axis=1, keepdims=True)      # (B, 1)
    gt_dist = jnp.sqrt(gt_d2)                                      # (B, 1)

    # ---- fused Gram matmul: [wo_norm; ay_emb] @ ay_emb^T, one MXU push ------
    stacked = jnp.concatenate([wo_norm, ay_emb], axis=0)           # (B+NR, D)
    gram = lax.dot_general(stacked, ay_emb, (((1,), (1,)), ((), ())),
                           preferred_element_type=jnp.float32)     # (B+NR, NR)
    cross = gram[:B]                                               # (B, NR)
    ay_gram = gram[B:]                                             # (NR, NR)

    # ||ay_emb[r]||^2 = diag(ay_gram), extracted lane-major as (1, NR) via an
    # iota eye-mask + sublane sum (XLU/VPU slots, no relayout).
    rows = lax.broadcasted_iota(jnp.int32, (NR, NR), 0)
    cols = lax.broadcasted_iota(jnp.int32, (NR, NR), 1)
    eye = (rows == cols).astype(jnp.float32)
    ay_sq = jnp.sum(ay_gram * eye, axis=0, keepdims=True)          # (1, NR)

    # ---- all pairwise distances via Gram form, additive mask, row min -------
    all_d2 = jnp.maximum(wn_sq + ay_sq - 2.0 * cross, 0.0)         # (B, NR)
    all_dist = jnp.sqrt(all_d2)                                    # (B, NR)
    t_dist = jnp.min(all_dist + in_y * 10000.0, axis=1,
                     keepdims=True)                                # (B, 1)

    # ---- loss = mean(margin + gt_dist - t_dist) -> scalar store to SMEM -----
    per_example = margin + gt_dist - t_dist                        # (B, 1)
    out_ref[0] = jnp.sum(per_example) * (1.0 / batch)


def distance_loss_pallas(wo, rel_weight, in_y, all_y, margin=1.0):
    B = wo.shape[0]
    # Stack the two selectors so the kernel needs a single (tiny) MXU matmul and
    # one fewer input DMA.
    sel = jnp.concatenate([in_y, all_y], axis=0).astype(jnp.float32)  # (B+NR, NR)
    kernel = functools.partial(_distance_loss_kernel,
                               margin=float(margin), batch=B)
    out = pl.pallas_call(
        kernel,
        out_shape=jax.ShapeDtypeStruct((1,), jnp.float32),
        in_specs=[pl.BlockSpec(memory_space=pltpu.MemorySpace.VMEM)] * 3,
        out_specs=pl.BlockSpec(memory_space=pltpu.MemorySpace.SMEM),
    )(wo, rel_weight, sel)
    return out[0]


def distance_loss_ref(wo, rel_weight, in_y, all_y, margin=1.0):
    """Pure-JAX reference mirroring the PyTorch forward."""
    wo = wo.astype(jnp.float32)
    row_norm = jnp.sqrt(jnp.sum(wo * wo, axis=1, keepdims=True))
    wo_norm = wo / jnp.maximum(row_norm, 1e-12)
    rel_emb = in_y @ rel_weight
    ay_emb = all_y @ rel_weight
    gt_dist = jnp.linalg.norm(wo_norm - rel_emb, axis=1)
    all_dist = jnp.linalg.norm(wo_norm[:, None, :] - ay_emb[None, :, :], axis=2)
    t_dist = jnp.min(all_dist + in_y * 10000.0, axis=1)
    return jnp.mean(margin + gt_dist - t_dist)


if __name__ == "__main__":
    # Small shapes consistent with the module: batch=8, nr=8, hidden=32.
    B, NR, D = 8, 8, 32
    margin = 1.0

    key = jax.random.PRNGKey(0)
    k_wo, k_rel, k_lab = jax.random.split(key, 3)

    wo = jax.random.normal(k_wo, (B, D), dtype=jnp.float32)
    # Deterministic "parameter": relation embedding table (NR, D).
    rel_weight = 0.1 * jax.random.normal(k_rel, (NR, D), dtype=jnp.float32)
    # One-hot ground-truth labels.
    labels = jax.random.randint(k_lab, (B,), 0, NR)
    in_y = jax.nn.one_hot(labels, NR, dtype=jnp.float32)
    # all_y: identity selecting every relation embedding.
    all_y = jnp.eye(NR, dtype=jnp.float32)

    loss = distance_loss_pallas(wo, rel_weight, in_y, all_y, margin)
    jax.block_until_ready(loss)

    loss_ref = distance_loss_ref(wo, rel_weight, in_y, all_y, margin)
    assert jnp.allclose(loss, loss_ref, atol=1e-4, rtol=1e-4), (loss, loss_ref)

    print("KERNEL_OK")
</pallas_src>

<mosaic_0001>
module attributes {stable_mosaic.version = 11 : i64} {
  func.func @_distance_loss_kernel(%arg0: memref<8x32xf32, #tpu.memory_space<vmem>>, %arg1: memref<8x32xf32, #tpu.memory_space<vmem>>, %arg2: memref<16x8xf32, #tpu.memory_space<vmem>>, %arg3: memref<1xf32, #tpu.memory_space<smem>>) attributes {dimension_semantics = [], scalar_prefetch = 0 : i64, scratch_operands = 0 : i64, tpu.core_type = #tpu.core_type<tc>} {
    %c0 = arith.constant 0 : index
    %c0_0 = arith.constant 0 : index
    %0 = vector.load %arg0[%c0, %c0_0] : memref<8x32xf32, #tpu.memory_space<vmem>>, vector<8x32xf32>
    %c0_1 = arith.constant 0 : index
    %c0_2 = arith.constant 0 : index
    %1 = vector.load %arg1[%c0_1, %c0_2] : memref<8x32xf32, #tpu.memory_space<vmem>>, vector<8x32xf32>
    %c0_3 = arith.constant 0 : index
    %c0_4 = arith.constant 0 : index
    %2 = vector.load %arg2[%c0_3, %c0_4] : memref<16x8xf32, #tpu.memory_space<vmem>>, vector<16x8xf32>
    %3 = vector.extract_strided_slice %2 {offsets = [0, 0], sizes = [8, 8], strides = [1, 1]} : vector<16x8xf32> to vector<8x8xf32>
    %4 = arith.mulf %0, %0 : vector<8x32xf32>
    %cst = arith.constant dense<0.000000e+00> : vector<8xf32>
    %5 = vector.multi_reduction <add>, %4, %cst [1] : vector<8x32xf32> to vector<8xf32>
    %6 = vector.shape_cast %5 : vector<8xf32> to vector<8x1xf32>
    %cst_5 = arith.constant 1.000000e-24 : f32
    %7 = vector.broadcast %cst_5 : f32 to vector<8x1xf32>
    %8 = arith.maximumf %6, %7 : vector<8x1xf32>
    %9 = math.rsqrt %8 : vector<8x1xf32>
    %10 = vector.broadcast %9 : vector<8x1xf32> to vector<8x32xf32>
    %11 = arith.mulf %0, %10 : vector<8x32xf32>
    %12 = arith.mulf %6, %9 : vector<8x1xf32>
    %13 = arith.mulf %12, %9 : vector<8x1xf32>
    %cst_6 = arith.constant dense<0.000000e+00> : vector<16x32xf32>
    %14 = tpu.matmul %2, %1, %cst_6 {dimension_numbers = #tpu.dot_dimension_numbers<[1], [0], [0], [1], [0, 0, 1, 1], [], []>} : vector<16x8xf32>, vector<8x32xf32>, vector<16x32xf32> -> vector<16x32xf32>
    %15 = vector.extract_strided_slice %14 {offsets = [0, 0], sizes = [8, 32], strides = [1, 1]} : vector<16x32xf32> to vector<8x32xf32>
    %16 = vector.extract_strided_slice %14 {offsets = [8, 0], sizes = [8, 32], strides = [1, 1]} : vector<16x32xf32> to vector<8x32xf32>
    %17 = arith.subf %11, %15 : vector<8x32xf32>
    %18 = arith.mulf %17, %17 : vector<8x32xf32>
    %cst_7 = arith.constant dense<0.000000e+00> : vector<8xf32>
    %19 = vector.multi_reduction <add>, %18, %cst_7 [1] : vector<8x32xf32> to vector<8xf32>
    %20 = vector.shape_cast %19 : vector<8xf32> to vector<8x1xf32>
    %21 = math.sqrt %20 : vector<8x1xf32>
    %22 = tpu.concatenate %11, %16 in 0 : vector<8x32xf32>, vector<8x32xf32> -> vector<16x32xf32>
    %cst_8 = arith.constant dense<0.000000e+00> : vector<16x8xf32>
    %23 = tpu.matmul %22, %16, %cst_8 {dimension_numbers = #tpu.dot_dimension_numbers<[1], [1], [0], [0], [0, 0, 1, 0], [], []>} : vector<16x32xf32>, vector<8x32xf32>, vector<16x8xf32> -> vector<16x8xf32>
    %24 = vector.extract_strided_slice %23 {offsets = [0, 0], sizes = [8, 8], strides = [1, 1]} : vector<16x8xf32> to vector<8x8xf32>
    %25 = vector.extract_strided_slice %23 {offsets = [8, 0], sizes = [8, 8], strides = [1, 1]} : vector<16x8xf32> to vector<8x8xf32>
    %26 = tpu.iota {dimensions = array<i32: 0>} : vector<8x8xi32>
    %27 = tpu.iota {dimensions = array<i32: 1>} : vector<8x8xi32>
    %28 = arith.cmpi eq, %26, %27 : vector<8x8xi32>
    %29 = arith.extui %28 : vector<8x8xi1> to vector<8x8xi32>
    %30 = arith.sitofp %29 : vector<8x8xi32> to vector<8x8xf32>
    %31 = arith.mulf %25, %30 : vector<8x8xf32>
    %cst_9 = arith.constant dense<0.000000e+00> : vector<8xf32>
    %32 = vector.multi_reduction <add>, %31, %cst_9 [0] : vector<8x8xf32> to vector<8xf32>
    %33 = vector.shape_cast %32 : vector<8xf32> to vector<1x8xf32>
    %34 = vector.broadcast %13 : vector<8x1xf32> to vector<8x8xf32>
    %35 = vector.broadcast %33 : vector<1x8xf32> to vector<8x8xf32>
    %36 = arith.addf %34, %35 : vector<8x8xf32>
    %cst_10 = arith.constant 2.000000e+00 : f32
    %37 = vector.broadcast %cst_10 : f32 to vector<8x8xf32>
    %38 = arith.mulf %37, %24 : vector<8x8xf32>
    %39 = arith.subf %36, %38 : vector<8x8xf32>
    %cst_11 = arith.constant 0.000000e+00 : f32
    %40 = vector.broadcast %cst_11 : f32 to vector<8x8xf32>
    %41 = arith.maximumf %39, %40 : vector<8x8xf32>
    %42 = math.sqrt %41 : vector<8x8xf32>
    %cst_12 = arith.constant 1.000000e+04 : f32
    %43 = vector.broadcast %cst_12 : f32 to vector<8x8xf32>
    %44 = arith.mulf %3, %43 : vector<8x8xf32>
    %45 = arith.addf %42, %44 : vector<8x8xf32>
    %cst_13 = arith.constant dense<0x7F800000> : vector<8xf32>
    %46 = vector.multi_reduction <minimumf>, %45, %cst_13 [1] : vector<8x8xf32> to vector<8xf32>
    %47 = vector.shape_cast %46 : vector<8xf32> to vector<8x1xf32>
    %cst_14 = arith.constant 1.000000e+00 : f32
    %48 = vector.broadcast %cst_14 : f32 to vector<8x1xf32>
    %49 = arith.addf %48, %21 : vector<8x1xf32>
    %50 = arith.subf %49, %47 : vector<8x1xf32>
    %51 = vector.shape_cast %50 : vector<8x1xf32> to vector<1x8x1xf32>
    %cst_15 = arith.constant dense<0.000000e+00> : vector<1xf32>
    %52 = vector.multi_reduction <add>, %51, %cst_15 [1, 2] : vector<1x8x1xf32> to vector<1xf32>
    %53 = vector.shape_cast %52 : vector<1xf32> to vector<1x1x1xf32>
    %54 = vector.extract %53[0, 0, 0] : f32 from vector<1x1x1xf32>
    %cst_16 = arith.constant 1.250000e-01 : f32
    %55 = arith.mulf %54, %cst_16 : f32
    %c0_17 = arith.constant 0 : index
    %56 = memref.load %arg3[%c0_17] : memref<1xf32, #tpu.memory_space<smem>>
    memref.store %55, %arg3[%c0_17] : memref<1xf32, #tpu.memory_space<smem>>
    return
  }
}

</mosaic_0001>

<llo_original>
// kernel: tpu_custom_call.1
$region0: #{tpu_custom_call.1}
  #allocation0 [shape = 'u32[]', space=smem, size = 0x4, offset = 0x4, fixed_abs, tag = 'smem constant byte address 0x4 - core index']
  #allocation1 [shape = 'u32[72,128]{1,0:T(1,128)}', space=vmem, size = 0x9000, scoped, tag = 'internal scratch']
  %s0 = inlined_call_operand.vmem [shape: f32[8,32], index: 0, kind: input, shape index: {}]
  %s1 = inlined_call_operand.vmem [shape: f32[8,32], index: 1, kind: input, shape index: {}]
  %s2 = inlined_call_operand.vmem [shape: f32[16,8], index: 2, kind: input, shape index: {}]
  %s3 = inlined_call_operand.hbm [shape: f32[1], index: 3, kind: output, shape index: {}]
  %s4 = sld [smem:[#allocation0]]
  $region22: #{tpu_custom_call.1} parent=0
    _
  %s6 = ssub.s32 1, %s4
  %s7 = scalar_select 0, %s6, %s4
  $region1: #{tpu_custom_call.1} parent=0
    #allocation2 [shape = 'u8[512]{0}', space=smem, size = 0x200, scoped, tag = 'output window, operand 0, single buffered']
    #allocation3 [shape = 's32[1]{0}', space=sflag, size = 0x4, scoped, tag = 'scoped memory for tpu_custom_call.1']
    %8 = vsyncpa [#allocation3], 0
    // Predicated region
    $region2: #{tpu_custom_call.1} parent=1 // pred_check
      _
    $region3: #{tpu_custom_call.1} parent=1 // pred_check_branch
      %10 = sbr.rel (0) target = $region5
    $region4: #{tpu_custom_call.1} parent=1 // pred_region
      _
    $region5: #{tpu_custom_call.1} parent=1 // pred_fallthru
      _
    // Predicated region
    $region6: #{tpu_custom_call.1} parent=1 // pred_check
      _
    $region7: #{tpu_custom_call.1} parent=1 // pred_check_branch
      %12 = sbr.rel (0) target = $region9
    $region8: #{tpu_custom_call.1} parent=1 // pred_region
      _
    $region9: #{tpu_custom_call.1} parent=1 // pred_fallthru
      _
    // Predicated region
    $region10: #{tpu_custom_call.1} parent=1 // pred_check
      _
    $region11: #{tpu_custom_call.1} parent=1 // pred_check_branch
      %14 = sbr.rel (0) target = $region13
    $region12: #{tpu_custom_call.1} parent=1 // pred_region
      _
    $region13: #{tpu_custom_call.1} parent=1 // pred_fallthru
      _
    %v15 = vld [vmem:[%s0] sm:$0xff]
    %v16 = vld [vmem:[%s1] sm:$0xff]
    %v17 = vld [vmem:[%s2] sm:$0xff]
    %v18 = vld [vmem:[%s2 + $0x8] sm:$0xff]
    %v19 = vmul.f32 %v15, %v15
    %vm20 = vcmask 261120
    %v21 = vsel %vm20, %v19, 0.0
    %22 = vadd.xlane.f32.xlu0 %v21
    %v23 = vpop.xlane.xlu0 %22
    %v24 = vmax.f32 %v23, 1e-24
    %v25 = vrsqrt.pop %v24
    %v26 = vmul.f32 %v25, %v24
    %v27 = vmul.f32 %v26, %v25
    %v28 = vmul.f32 0.5, %v27
    %v29 = vsub.f32 1.5, %v28
    %v30 = vmul.f32 %v25, %v29
    %vm31 = vweird.f32 %v24
    %vm32 = vweird.f32 %v25
    %vm33 = vmor %vm31, %vm32
    %v34 = vsel %vm33, %v25, %v30
    %v35 = vmul.f32 %v15, %v34
    %v36 = vmul.f32 %v23, %v34
    %v37 = vmul.f32 %v36, %v34
    %vm38 = vcmask 64512
    %v40 = vsel %vm38, %v17, 0
    %v43 = vsel %vm38, %v18, 0
    %45 = vmatpush.msra.mxu0 0.0
    %46 = vmatpush.msra.mxu0 0.0
    %47 = vmatpush.msra.mxu0 0.0
    %48 = vmatpush.msra.mxu0 0.0
    %49 = vmatpush.msra.mxu0 0.0
    %50 = vmatpush.msra.mxu0 0.0
    %51 = vmatpush.msra.mxu0 0.0
    %52 = vmatpush.msra.mxu0 0.0
    %53 = vmatpush.msra.mxu0 0.0
    %54 = vmatpush.msra.mxu0 0.0
    %55 = vmatpush.msra.mxu0 0.0
    %56 = vmatpush.msra.mxu0 0.0
    %57 = vmatpush.msra.mxu0 0.0
    %58 = vmatpush.msra.mxu0 0.0
    %59 = vmatpush.msra.mxu0 0.0
    %60 = vmatpush.msra.mxu0 %v16
    %61 = vmatmul.f32.gmra.mxu0 %v40
    %v62 = vpop.f32.mrf.mxu0
    %v63 = vadd.f32 0.0, %v62
    %64 = vmatmul.f32.gmra.mxu0 %v43
    %v65 = vpop.f32.mrf.mxu0
    %v66 = vadd.f32 0.0, %v65
    %67 = vdwg.mxu0
    %v68 = vsub.f32 %v35, %v63
    %v69 = vmul.f32 %v68, %v68
    %v70 = vsel %vm20, %v69, 0.0
    %71 = vadd.xlane.f32.xlu0 %v70
    %v72 = vpop.xlane.xlu0 %71
    %v73 = vrsqrt.pop %v72
    %v74 = vmul.f32 %v73, %v72
    %v75 = vmul.f32 %v74, %v73
    %v76 = vmul.f32 0.5, %v75
    %v77 = vsub.f32 1.5, %v76
    %v78 = vmul.f32 %v73, %v77
    %v79 = vmul.f32 %v72, %v78
    %vm80 = vcmp.eq.f32.partialorder %v72, inf
    %v81 = vsel %vm80, %v72, %v79
    %vm82 = vcmp.eq.f32.partialorder %v72, 0.0
    %v83 = vand.u32 %v72, 2147483648
    %v84 = vsel %vm82, %v83, %v81
    %v86 = vsel %vm20, %v35, 0
    %v89 = vsel %vm20, %v66, 0
    %91 = vmatpush.xpose.msra.mxu0 0.0
    %92 = vmatpush.xpose.msra.mxu0 0.0
    %93 = vmatpush.xpose.msra.mxu0 0.0
    %94 = vmatpush.xpose.msra.mxu0 0.0
    %95 = vmatpush.xpose.msra.mxu0 0.0
    %96 = vmatpush.xpose.msra.mxu0 0.0
    %97 = vmatpush.xpose.msra.mxu0 0.0
    %98 = vmatpush.xpose.msra.mxu0 0.0
    %99 = vmatpush.xpose.msra.mxu0 0.0
    %100 = vmatpush.xpose.msra.mxu0 0.0
    %101 = vmatpush.xpose.msra.mxu0 0.0
    %102 = vmatpush.xpose.msra.mxu0 0.0
    %103 = vmatpush.xpose.msra.mxu0 0.0
    %104 = vmatpush.xpose.msra.mxu0 0.0
    %105 = vmatpush.xpose.msra.mxu0 0.0
    %106 = vmatpush.xpose.msra.mxu0 %v89
    %107 = vmatmul.f32.gmra.mxu0 %v86
    %v108 = vpop.f32.mrf.mxu0
    %v109 = vadd.f32 0.0, %v108
    %110 = vmatmul.f32.gmra.mxu0 %v89
    %v111 = vpop.f32.mrf.mxu0
    %v112 = vadd.f32 0.0, %v111
    %113 = vdwg.mxu0
    %v114 = vlaneseq
    %v115 = vshrl.u32 %v114, 7
    %v116 = vlaneseq
    %v117 = vand.u32 %v116, 127
    %vm118 = vcmp.eq.s32.totalorder %v115, %v117
    %v119 = vsel %vm118, 1, 0
    %v120 = vcvt.s32.f32 %v119
    %v121 = vmul.f32 %v112, %v120
    %v122 = vsel %vm38, %v121, 0.0
    %v123 = vrot.slane %v122, 4
    %v124 = vadd.f32 %v122, %v123
    %v125 = vrot.slane %v124, 2
    %v126 = vadd.f32 %v124, %v125
    %v127 = vrot.slane %v126, 1
    %v128 = vadd.f32 %v126, %v127
    %v129 = vadd.f32 %v37, %v128
    %v130 = vmul.f32 %v109, 2.0
    %v131 = vsub.f32 %v129, %v130
    %v132 = vmax.f32 %v131, 0.0
    %v133 = vrsqrt.pop %v132
    %v134 = vmul.f32 %v133, %v132
    %v135 = vmul.f32 %v134, %v133
    %v136 = vmul.f32 0.5, %v135
    %v137 = vsub.f32 1.5, %v136
    %v138 = vmul.f32 %v133, %v137
    %v139 = vmul.f32 %v132, %v138
    %vm140 = vcmp.eq.f32.partialorder %v132, inf
    %v141 = vsel %vm140, %v132, %v139
    %vm142 = vcmp.eq.f32.partialorder %v132, 0.0
    %v143 = vand.u32 %v132, 2147483648
    %v144 = vsel %vm142, %v143, %v141
    %v145 = vmul.f32 %v17, 10000.0
    %v146 = vadd.f32 %v144, %v145
    %v147 = vsel %vm38, %v146, inf
    %148 = vmin.xlane.f32.xlu0 %v147
    %v149 = vpop.xlane.xlu0 %148
    %v150 = vadd.f32 %v84, 1.0
    %v151 = vsub.f32 %v150, %v149
    %vm152 = vcmask 7168
    %v153 = vsel %vm152, %v151, 0.0
    %154 = vadd.xlane.f32.xlu0 %v153
    %v155 = vpop.xlane.xlu0 %154
    %v156 = vrot.slane %v155, 4
    %v157 = vadd.f32 %v155, %v156
    %v158 = vrot.slane %v157, 2
    %v159 = vadd.f32 %v157, %v158
    %v160 = vrot.slane %v159, 1
    %v161 = vadd.f32 %v159, %v160
    %s162 = vtos %v161
    %s163 = smul.f32 %s162, 0.125
    %s164 = scalar_lea.smem [#allocation2], 0
    %165 = sst [smem:[%s164]] %s163
    // Predicated region
    $region14: #{tpu_custom_call.1} parent=1 // pred_check
      _
    $region15: #{tpu_custom_call.1} parent=1 // pred_check_branch
      %167 = sbr.rel (0) target = $region17
    $region16: #{tpu_custom_call.1} parent=1 // pred_region
      %169 = vsyncadd [#allocation3], 0
      %s171 = sshll.u32 %s3, 4
      %s172 = int_to_ptr.hbm [resolvable:$true] %s171
      %174 = dma.smem_to_hbm [#allocation2], 16, %s172, [#allocation3]
    $region17: #{tpu_custom_call.1} parent=1 // pred_fallthru
      _
    // Predicated region
    $region18: #{tpu_custom_call.1} parent=1 // pred_check
      _
    $region19: #{tpu_custom_call.1} parent=1 // pred_check_branch
      %176 = sbr.rel (0) target = $region21
    $region20: #{tpu_custom_call.1} parent=1 // pred_region
      %178 = dma.done [#allocation3], 16
    $region21: #{tpu_custom_call.1} parent=1 // pred_fallthru
      _
    %179 = sfence
    %180 = vsyncpa [#allocation3], 1

</llo_original>
